<compile_context>
chip_gen: v5e
topology: v5e:2x2
jax: 0.10.0
libtpu: 0.0.40
codegen_flags: <defaults>
</compile_context>

<pallas_src>
import jax
import jax.numpy as jnp
from jax.experimental import pallas as pl
from jax.experimental.pallas import tpu as pltpu


def _gather_onehot_kernel(idcs_ref, out_ref, sel_ref):
    """Single-step gather: sel[m, :] = out[idcs[m], :] via one-hot MXU matmul.

    idcs_ref: (M, 1) int32 in VMEM
    out_ref:  (N, C) float  in VMEM (whole prediction tensor resident)
    sel_ref:  (M, C) float  in VMEM
    """
    m, _ = sel_ref.shape
    n = out_ref.shape[0]

    idcs = idcs_ref[...]                                        # (M, 1) int32
    col_ids = jax.lax.broadcasted_iota(jnp.int32, (m, n), 1)    # (M, N)
    onehot = (col_ids == idcs).astype(out_ref.dtype)            # (M, N) selection matrix

    sel_ref[...] = jnp.dot(
        onehot, out_ref[...], preferred_element_type=jnp.float32
    ).astype(sel_ref.dtype)


def post_process_forward(out, gt_cl_cands_onehot, target_idcs):
    """Pallas equivalent of PostProcess.forward.

    Args:
      out:                 [N, C] float32 prediction logits per agent.
      gt_cl_cands_onehot:  [N, C] float32 one-hot ground-truth candidate labels
                           (the `[1]` element of each gt_cl_cands entry).
      target_idcs:         [M] int32 agent indices to post-process.

    Returns:
      dict with 'out'      -> [M, C] gathered predictions (out[target_idcs])
                'gt_preds' -> [M, C] first M ground-truth label rows.
    """
    N, C = out.shape
    M = target_idcs.shape[0]

    # (M, 1) index column so the in-kernel compare is a cheap lane-broadcast.
    idcs_col = target_idcs.astype(jnp.int32).reshape(M, 1)

    # Single invocation, no grid: everything resident in VMEM.
    # TODO(synk): if N * C grows to multi-MiB (v7x has only 64 MiB VMEM),
    # chunk N with a reduction grid axis + accumulator instead of keeping the
    # full `out` tensor resident.
    sel_out = pl.pallas_call(
        _gather_onehot_kernel,
        out_shape=jax.ShapeDtypeStruct((M, C), out.dtype),
        in_specs=[
            pl.BlockSpec(memory_space=pltpu.MemorySpace.VMEM),  # idcs_col
            pl.BlockSpec(memory_space=pltpu.MemorySpace.VMEM),  # out (resident)
        ],
        out_specs=pl.BlockSpec(memory_space=pltpu.MemorySpace.VMEM),
    )(idcs_col, out)

    # gt_preds = first M ground-truth rows (mirrors the PyTorch loop
    # `for i in range(len(target_idcs))`).  Static slice -> plain XLA, no kernel.
    gt_preds = gt_cl_cands_onehot[:M]

    # TODO(synk): .detach().cpu().numpy() host transfer / python-list packing has
    # no Pallas equivalent; results are returned as device arrays.
    return {"out": sel_out, "gt_preds": gt_preds}


if __name__ == "__main__":
    key = jax.random.PRNGKey(0)
    k_out, k_gt = jax.random.split(key)

    N, C, M = 8, 128, 4   # agents, candidate slots, number of target agents

    out = jax.random.normal(k_out, (N, C), dtype=jnp.float32)
    # one-hot ground-truth candidate labels per agent
    gt_idx = jax.random.randint(k_gt, (N,), 0, C)
    gt_cl_cands_onehot = jax.nn.one_hot(gt_idx, C, dtype=jnp.float32)

    target_idcs = jnp.array([1, 3, 5, 6], dtype=jnp.int32)

    post_out = post_process_forward(out, gt_cl_cands_onehot, target_idcs)
    jax.block_until_ready(post_out["out"])
    jax.block_until_ready(post_out["gt_preds"])

    # reference check (plain JAX gather semantics)
    ref_out = out[target_idcs]
    ref_gt = gt_cl_cands_onehot[:M]
    assert jnp.allclose(post_out["out"], ref_out)
    assert jnp.allclose(post_out["gt_preds"], ref_gt)

    print("KERNEL_OK")
</pallas_src>

<mosaic_0001>
module attributes {stable_mosaic.version = 11 : i64} {
  func.func @_gather_onehot_kernel(%arg0: memref<4x1xi32, #tpu.memory_space<vmem>>, %arg1: memref<8x128xf32, #tpu.memory_space<vmem>>, %arg2: memref<4x128xf32, #tpu.memory_space<vmem>>) attributes {dimension_semantics = [], scalar_prefetch = 0 : i64, scratch_operands = 0 : i64, tpu.core_type = #tpu.core_type<tc>} {
    %c0 = arith.constant 0 : index
    %c0_0 = arith.constant 0 : index
    %0 = vector.load %arg0[%c0, %c0_0] : memref<4x1xi32, #tpu.memory_space<vmem>>, vector<4x1xi32>
    %1 = tpu.iota {dimensions = array<i32: 1>} : vector<4x8xi32>
    %2 = vector.broadcast %0 : vector<4x1xi32> to vector<4x8xi32>
    %3 = arith.cmpi eq, %1, %2 : vector<4x8xi32>
    %4 = arith.extui %3 : vector<4x8xi1> to vector<4x8xi32>
    %5 = arith.sitofp %4 : vector<4x8xi32> to vector<4x8xf32>
    %c0_1 = arith.constant 0 : index
    %c0_2 = arith.constant 0 : index
    %6 = vector.load %arg1[%c0_1, %c0_2] : memref<8x128xf32, #tpu.memory_space<vmem>>, vector<8x128xf32>
    %cst = arith.constant dense<0.000000e+00> : vector<4x128xf32>
    %7 = tpu.matmul %5, %6, %cst {dimension_numbers = #tpu.dot_dimension_numbers<[1], [0], [0], [1], [0, 0, 1, 1], [], []>} : vector<4x8xf32>, vector<8x128xf32>, vector<4x128xf32> -> vector<4x128xf32>
    %c0_3 = arith.constant 0 : index
    %c0_4 = arith.constant 0 : index
    %8 = vector.load %arg2[%c0_3, %c0_4] : memref<4x128xf32, #tpu.memory_space<vmem>>, vector<4x128xf32>
    tpu.vector_store %arg2[%c0_3, %c0_4], %7 {strides = array<i32>} : memref<4x128xf32, #tpu.memory_space<vmem>>, vector<4x128xf32>,
    return
  }
}

</mosaic_0001>

<llo_original>
// kernel: tpu_custom_call.1
$region0: #{tpu_custom_call.1}
  #allocation0 [shape = 'u32[]', space=smem, size = 0x4, offset = 0x4, fixed_abs, tag = 'smem constant byte address 0x4 - core index']
  #allocation1 [shape = 'u32[72,128]{1,0:T(1,128)}', space=vmem, size = 0x9000, scoped, tag = 'internal scratch']
  %s0 = inlined_call_operand.vmem [shape: s32[4,1], index: 0, kind: input, shape index: {}]
  %s1 = inlined_call_operand.hbm [shape: f32[8,128], index: 1, kind: input, shape index: {}]
  %s2 = inlined_call_operand.hbm [shape: f32[4,128], index: 2, kind: output, shape index: {}]
  %s3 = sld [smem:[#allocation0]]
  $region22: #{tpu_custom_call.1} parent=0
    _
  %s5 = ssub.s32 1, %s3
  %s6 = scalar_select 0, %s5, %s3
  $region1: #{tpu_custom_call.1} parent=0
    #allocation2 [shape = 'u8[4096]{0}', space=vmem, size = 0x1000, scoped, tag = 'input window, operand 1, single buffered']
    #allocation3 [shape = 's32[1]{0}', space=sflag, size = 0x4, scoped, tag = 'scoped memory for tpu_custom_call.1']
    #allocation4 [shape = 's32[1]{0}', space=sflag, size = 0x4, scoped, tag = 'scoped memory for tpu_custom_call.1']
    #allocation5 [shape = 'u8[2048]{0}', space=vmem, size = 0x800, scoped, tag = 'output window, operand 0, single buffered']
    %7 = vsyncpa [#allocation3], 0
    %8 = vsyncpa [#allocation4], 0
    // Predicated region
    $region2: #{tpu_custom_call.1} parent=1 // pred_check
      _
    $region3: #{tpu_custom_call.1} parent=1 // pred_check_branch
      %10 = sbr.rel (0) target = $region5
    $region4: #{tpu_custom_call.1} parent=1 // pred_region
      _
    $region5: #{tpu_custom_call.1} parent=1 // pred_fallthru
      _
    // Predicated region
    $region6: #{tpu_custom_call.1} parent=1 // pred_check
      _
    $region7: #{tpu_custom_call.1} parent=1 // pred_check_branch
      %12 = sbr.rel (0) target = $region9
    $region8: #{tpu_custom_call.1} parent=1 // pred_region
      %14 = vsyncadd [#allocation3], 0
      %s16 = sshll.u32 %s1, 4
      %s17 = int_to_ptr.hbm [resolvable:$true] %s16
      %s18 = sshll.u32 [#allocation2], 4
      %s19 = int_to_ptr.vmem [resolvable:$true] %s18
      %21 = dma.hbm_to_vmem [thread:$0]  %s17, 128, %s19, [#allocation3]
    $region9: #{tpu_custom_call.1} parent=1 // pred_fallthru
      _
    // Predicated region
    $region10: #{tpu_custom_call.1} parent=1 // pred_check
      _
    $region11: #{tpu_custom_call.1} parent=1 // pred_check_branch
      %23 = sbr.rel (0) target = $region13
    $region12: #{tpu_custom_call.1} parent=1 // pred_region
      %25 = dma.done [#allocation3], 128
    $region13: #{tpu_custom_call.1} parent=1 // pred_fallthru
      _
    %v26 = vld [vmem:[%s0] sm:$0xf]
    %v27 = vlaneseq
    %v28 = vand.u32 %v27, 127
    %29 = vset.pattern.permute.xlu0 0
    %30 = vperm.xlu0 %29, %v26
    %v31 = vpop.permute.xlu0 %30
    %vm32 = vcmp.eq.s32.totalorder %v28, %v31
    %v33 = vsel %vm32, 1, 0
    %v34 = vcvt.s32.f32 %v33
    %v35 = vld [vmem:[#allocation2] sm:$0xff]
    %vm36 = vcmask 64512
    %v38 = vsel %vm36, %v34, 0
    %40 = vmatpush.msra.mxu0 0.0
    %41 = vmatpush.msra.mxu0 0.0
    %42 = vmatpush.msra.mxu0 0.0
    %43 = vmatpush.msra.mxu0 0.0
    %44 = vmatpush.msra.mxu0 0.0
    %45 = vmatpush.msra.mxu0 0.0
    %46 = vmatpush.msra.mxu0 0.0
    %47 = vmatpush.msra.mxu0 0.0
    %48 = vmatpush.msra.mxu0 0.0
    %49 = vmatpush.msra.mxu0 0.0
    %50 = vmatpush.msra.mxu0 0.0
    %51 = vmatpush.msra.mxu0 0.0
    %52 = vmatpush.msra.mxu0 0.0
    %53 = vmatpush.msra.mxu0 0.0
    %54 = vmatpush.msra.mxu0 0.0
    %55 = vmatpush.msra.mxu0 %v35
    %56 = vmatmul.f32.gmra.mxu0 %v38
    %v57 = vpop.f32.mrf.mxu0
    %v58 = vadd.f32 0.0, %v57
    %59 = vdwg.mxu0
    %60 = vst [vmem:[#allocation5] sm:$0xf] %v58
    // Predicated region
    $region14: #{tpu_custom_call.1} parent=1 // pred_check
      _
    $region15: #{tpu_custom_call.1} parent=1 // pred_check_branch
      %62 = sbr.rel (0) target = $region17
    $region16: #{tpu_custom_call.1} parent=1 // pred_region
      %64 = vsyncadd [#allocation4], 0
      %s66 = sshll.u32 [#allocation5], 4
      %s67 = int_to_ptr.vmem [resolvable:$true] %s66
      %s68 = sshll.u32 %s2, 4
      %s69 = int_to_ptr.hbm [resolvable:$true] %s68
      %71 = dma.vmem_to_hbm [thread:$0]  %s67, 64, %s69, [#allocation4]
    $region17: #{tpu_custom_call.1} parent=1 // pred_fallthru
      _
    // Predicated region
    $region18: #{tpu_custom_call.1} parent=1 // pred_check
      _
    $region19: #{tpu_custom_call.1} parent=1 // pred_check_branch
      %73 = sbr.rel (0) target = $region21
    $region20: #{tpu_custom_call.1} parent=1 // pred_region
      %75 = dma.done [#allocation4], 64
    $region21: #{tpu_custom_call.1} parent=1 // pred_fallthru
      _
    %76 = vsyncpa [#allocation3], 1
    %77 = vsyncpa [#allocation4], 1

</llo_original>
